<compile_context>
chip_gen: v5e
topology: v5e:2x2
jax: 0.10.0
libtpu: 0.0.40
codegen_flags: <defaults>
</compile_context>

<pallas_src>
import functools
import math

import jax
import jax.numpy as jnp
from jax.experimental import pallas as pl
from jax.experimental.pallas import tpu as pltpu


LOG_STD_MIN = -20.0
LOG_STD_MAX = 2.0
_HALF_LOG_2PI = 0.5 * math.log(2.0 * math.pi)


# ----------------------------------------------------------------------------- kernels

def _layer1(x, w1, b1):
    """First linear + relu.  num_inputs is tiny (4), so an MXU push would be >96% padding;
    do K broadcast-FMAs on the VPU instead (f32).  Falls back to the MXU for larger K."""
    k_in = x.shape[1]
    if k_in <= 8:
        w1f = w1.astype(jnp.float32)
        acc = b1.astype(jnp.float32) + x[:, 0:1].astype(jnp.float32) * w1f[0:1, :]
        for k in range(1, k_in):
            acc = acc + x[:, k:k + 1].astype(jnp.float32) * w1f[k:k + 1, :]
        return jnp.maximum(acc, 0.0)
    h = jnp.dot(x.astype(w1.dtype), w1, preferred_element_type=jnp.float32) + b1
    return jnp.maximum(h, 0.0)


def _mlp_heads(x, w1, b1, w2, b2, wh, bh):
    """linear1 -> relu -> linear2 -> relu -> fused [mean | log_std] head (f32 accum).
    Activations are cast to the (bf16) weight dtype right before each MXU dot."""
    h1 = _layer1(x, w1, b1)
    h2 = jnp.maximum(
        jnp.dot(h1.astype(w2.dtype), w2, preferred_element_type=jnp.float32) + b2, 0.0)
    return jnp.dot(h2.astype(wh.dtype), wh, preferred_element_type=jnp.float32) + bh


def _policy_fwd_kernel(x_ref, w1_ref, b1_ref, w2_ref, b2_ref, wh_ref, bh_ref,
                       mean_ref, log_std_ref):
    """forward(): mean and clamp(log_std) as two separate outputs (no wrapper slices)."""
    heads = _mlp_heads(x_ref[...], w1_ref[...], b1_ref[...],
                       w2_ref[...], b2_ref[...], wh_ref[...], bh_ref[...])
    num_actions = mean_ref.shape[-1]
    mean_ref[...] = heads[:, :num_actions].astype(mean_ref.dtype)
    log_std_ref[...] = jnp.clip(heads[:, num_actions:],
                                LOG_STD_MIN, LOG_STD_MAX).astype(log_std_ref.dtype)


def _policy_eval_kernel(x_ref, w1_ref, b1_ref, w2_ref, b2_ref, wh_ref, bh_ref, z_ref,
                        act_ref, logp_ref, mean_ref, log_std_ref, *, epsilon):
    """evaluate(): forward + reparameterized tanh-Gaussian epilogue fused in one kernel.
    exp / tanh / log run on the EUP slot (otherwise idle here) -> essentially free filler.
    NOTE: padded rows of the last batch tile may compute on garbage (inf/nan) -- their
    output writes are masked and there is no reduction over the batch axis."""
    heads = _mlp_heads(x_ref[...], w1_ref[...], b1_ref[...],
                       w2_ref[...], b2_ref[...], wh_ref[...], bh_ref[...])
    num_actions = act_ref.shape[-1]

    mean = heads[:, :num_actions]
    log_std = jnp.clip(heads[:, num_actions:], LOG_STD_MIN, LOG_STD_MAX)
    std = jnp.exp(log_std)

    z = z_ref[...]
    pre = mean + std * z
    action = jnp.tanh(pre)
    # Normal(mean, std).log_prob(mean + std*z) = -z^2/2 - log_std - log(sqrt(2*pi))
    # (per-action-dim, matching the PyTorch module -- no sum over the action axis).
    log_prob = (-0.5 * z * z - log_std - _HALF_LOG_2PI
                - jnp.log(1.0 - action * action + epsilon))

    act_ref[...] = action.astype(act_ref.dtype)
    logp_ref[...] = log_prob.astype(logp_ref.dtype)
    mean_ref[...] = mean.astype(mean_ref.dtype)
    log_std_ref[...] = log_std.astype(log_std_ref.dtype)


# ----------------------------------------------------------------------------- wrappers

def prepare_params(p, compute_dtype=jnp.bfloat16):
    """One-time conversion from PyTorch (out, in) layout to kernel layout.

    Weights are stored in `compute_dtype` (bf16 by default -> native MXU inputs); biases
    stay f32 (they are added to the f32 accumulator).  Call once outside the hot loop;
    the jitted forward never transposes or casts weights.
    """
    wd = compute_dtype
    return dict(
        w1=jnp.asarray(p["w1"], jnp.float32).T.astype(wd),
        b1=jnp.asarray(p["b1"], jnp.float32).reshape(1, -1),
        w2=jnp.asarray(p["w2"], jnp.float32).T.astype(wd),
        b2=jnp.asarray(p["b2"], jnp.float32).reshape(1, -1),
        wh=jnp.concatenate([jnp.asarray(p["wm"], jnp.float32).T,
                            jnp.asarray(p["ws"], jnp.float32).T], axis=1).astype(wd),
        bh=jnp.concatenate([jnp.asarray(p["bm"], jnp.float32),
                            jnp.asarray(p["bs"], jnp.float32)]).reshape(1, -1),
    )


def _batch_tile(batch, cap=1024):
    """Batch tile: single block for tiny batches; otherwise at least two grid steps
    (so the "parallel" batch axis can split across both TensorCores on v7x), rounded up
    to a sublane multiple and capped at `cap` (sweep 512/1024/2048).  At tb=1024 the
    per-tile VMEM footprint (~1.1 MiB incl. double-buffering and the (tb,128) f32
    intermediates) is far below the 32 MiB scoped default."""
    if batch < 16:
        return batch
    half = -(-batch // 2)                 # cdiv(batch, 2)
    half = ((half + 7) // 8) * 8          # round up to sublane multiple
    return min(cap, half)


def _weight_bytes(kparams):
    return sum(int(kparams[k].size) * kparams[k].dtype.itemsize
               for k in ("w1", "b1", "w2", "b2", "wh", "bh"))


@jax.jit
def policy_forward(state, kparams):
    """Pallas forward of PolicyNetwork.forward().

    state:   (B, num_inputs) float32
    kparams: output of prepare_params() (kernel layout)
    returns  (mean, log_std), each (B, A) float32 -- two separate kernel outputs.
    """
    B, I = state.shape
    H = kparams["w1"].shape[1]
    two_a = kparams["wh"].shape[1]
    A = two_a // 2
    tb = _batch_tile(B)

    wspec = lambda arr: pl.BlockSpec(arr.shape, lambda i: (0, 0))   # grid-invariant weights
    row_spec = lambda cols: pl.BlockSpec((tb, cols), lambda i: (i, 0))

    cost = pl.CostEstimate(
        flops=2 * B * (I * H + H * H + H * two_a),
        transcendentals=0,
        bytes_accessed=4 * (B * I + 2 * B * A) + _weight_bytes(kparams),
    )

    mean, log_std = pl.pallas_call(
        _policy_fwd_kernel,
        out_shape=(jax.ShapeDtypeStruct((B, A), jnp.float32),
                   jax.ShapeDtypeStruct((B, A), jnp.float32)),
        grid=(pl.cdiv(B, tb),),
        in_specs=[
            row_spec(I),
            wspec(kparams["w1"]), wspec(kparams["b1"]),
            wspec(kparams["w2"]), wspec(kparams["b2"]),
            wspec(kparams["wh"]), wspec(kparams["bh"]),
        ],
        out_specs=(row_spec(A), row_spec(A)),
        compiler_params=pltpu.CompilerParams(dimension_semantics=("parallel",)),
        cost_estimate=cost,
    )(state, kparams["w1"], kparams["b1"], kparams["w2"], kparams["b2"],
      kparams["wh"], kparams["bh"])
    return mean, log_std


@functools.partial(jax.jit, static_argnames=("epsilon",))
def policy_evaluate(state, z, kparams, epsilon=1e-6):
    """Fused PolicyNetwork.evaluate(): forward + tanh-Gaussian sampling epilogue.

    z: standard-normal noise, ideally already shaped (B, A) (avoids a wrapper broadcast).
    returns (action, log_prob, z, mean, log_std) -- all (B, A) float32.
    """
    B, I = state.shape
    H = kparams["w1"].shape[1]
    two_a = kparams["wh"].shape[1]
    A = two_a // 2
    tb = _batch_tile(B)

    z = jnp.asarray(z, jnp.float32)
    if z.shape != (B, A):
        # Pass (B, A) noise to skip this extra XLA broadcast in the RL inner loop.
        z = jnp.broadcast_to(z, (B, A))

    wspec = lambda arr: pl.BlockSpec(arr.shape, lambda i: (0, 0))
    row_spec = lambda cols: pl.BlockSpec((tb, cols), lambda i: (i, 0))

    cost = pl.CostEstimate(
        flops=2 * B * (I * H + H * H + H * two_a),
        transcendentals=3 * B * A,
        bytes_accessed=4 * (B * I + B * A + 4 * B * A) + _weight_bytes(kparams),
    )

    action, log_prob, mean, log_std = pl.pallas_call(
        functools.partial(_policy_eval_kernel, epsilon=epsilon),
        out_shape=(jax.ShapeDtypeStruct((B, A), jnp.float32),
                   jax.ShapeDtypeStruct((B, A), jnp.float32),
                   jax.ShapeDtypeStruct((B, A), jnp.float32),
                   jax.ShapeDtypeStruct((B, A), jnp.float32)),
        grid=(pl.cdiv(B, tb),),
        in_specs=[
            row_spec(I),
            wspec(kparams["w1"]), wspec(kparams["b1"]),
            wspec(kparams["w2"]), wspec(kparams["b2"]),
            wspec(kparams["wh"]), wspec(kparams["bh"]),
            row_spec(A),
        ],
        out_specs=(row_spec(A), row_spec(A), row_spec(A), row_spec(A)),
        compiler_params=pltpu.CompilerParams(dimension_semantics=("parallel",)),
        cost_estimate=cost,
    )(state, kparams["w1"], kparams["b1"], kparams["w2"], kparams["b2"],
      kparams["wh"], kparams["bh"], z)
    return action, log_prob, z, mean, log_std


# ----------------------------------------------------------------------------- init / ref

def init_params(key, num_inputs, num_actions, hidden_size, init_w=0.003):
    """Deterministic synthetic init mirroring nn.Linear shapes + uniform heads
    (PyTorch (out, in) layout; convert with prepare_params before calling the kernel)."""
    ks = jax.random.split(key, 8)

    def linear_init(kw, kb, fan_in, shape_w, shape_b):
        bound = 1.0 / jnp.sqrt(fan_in)
        w = jax.random.uniform(kw, shape_w, jnp.float32, -bound, bound)
        b = jax.random.uniform(kb, shape_b, jnp.float32, -bound, bound)
        return w, b

    w1, b1 = linear_init(ks[0], ks[1], num_inputs, (hidden_size, num_inputs), (hidden_size,))
    w2, b2 = linear_init(ks[2], ks[3], hidden_size, (hidden_size, hidden_size), (hidden_size,))
    wm = jax.random.uniform(ks[4], (num_actions, hidden_size), jnp.float32, -init_w, init_w)
    bm = jax.random.uniform(ks[5], (num_actions,), jnp.float32, -init_w, init_w)
    ws = jax.random.uniform(ks[6], (num_actions, hidden_size), jnp.float32, -init_w, init_w)
    bs = jax.random.uniform(ks[7], (num_actions,), jnp.float32, -init_w, init_w)
    return dict(w1=w1, b1=b1, w2=w2, b2=b2, wm=wm, bm=bm, ws=ws, bs=bs)


def _reference_forward(state, p):
    h1 = jnp.maximum(state @ p["w1"].T + p["b1"], 0.0)
    h2 = jnp.maximum(h1 @ p["w2"].T + p["b2"], 0.0)
    mean = h2 @ p["wm"].T + p["bm"]
    log_std = jnp.clip(h2 @ p["ws"].T + p["bs"], LOG_STD_MIN, LOG_STD_MAX)
    return mean, log_std


def _reference_evaluate(state, z, p, epsilon=1e-6):
    mean, log_std = _reference_forward(state, p)
    std = jnp.exp(log_std)
    action = jnp.tanh(mean + std * z)
    log_prob = (-0.5 * z * z - log_std - _HALF_LOG_2PI
                - jnp.log(1.0 - action * action + epsilon))
    return action, log_prob, mean, log_std


if __name__ == "__main__":
    # H=128 is lane-aligned (full vreg lane utilization); pad/round hidden_size to a
    # multiple of 128 at the model level if possible.
    num_inputs, num_actions, hidden_size = 4, 2, 128

    key = jax.random.PRNGKey(0)
    k_state, k_params, k_z, k_state2, k_z2 = jax.random.split(key, 5)
    torch_params = init_params(k_params, num_inputs, num_actions, hidden_size)

    # ---- multi-tile grid exercise (B=40 -> 2 batch tiles with a padded last tile), f32 path
    batch_big = 40
    state_big = jax.random.normal(k_state2, (batch_big, num_inputs), jnp.float32)
    z_big = jax.random.normal(k_z2, (batch_big, num_actions), jnp.float32)
    kparams_f32 = prepare_params(torch_params, compute_dtype=jnp.float32)

    mean, log_std = policy_forward(state_big, kparams_f32)
    action, log_prob, _, mean_e, log_std_e = policy_evaluate(state_big, z_big, kparams_f32)
    jax.block_until_ready((mean, log_std, action, log_prob))

    ref_mean, ref_log_std = _reference_forward(state_big, torch_params)
    ref_act, ref_logp, _, _ = _reference_evaluate(state_big, z_big, torch_params)
    assert jnp.allclose(mean, ref_mean, atol=1e-4), "f32 mean mismatch"
    assert jnp.allclose(log_std, ref_log_std, atol=1e-4), "f32 log_std mismatch"
    assert jnp.allclose(action, ref_act, atol=1e-4), "f32 action mismatch"
    assert jnp.allclose(log_prob, ref_logp, atol=1e-4), "f32 log_prob mismatch"
    assert jnp.allclose(mean_e, ref_mean, atol=1e-4) and jnp.allclose(log_std_e, ref_log_std, atol=1e-4)

    # ---- small actor-inference batch, bf16 MXU path (default prepare_params dtype)
    batch = 8
    state = jax.random.normal(k_state, (batch, num_inputs), jnp.float32)
    z = jax.random.normal(k_z, (batch, num_actions), jnp.float32)
    kparams_bf16 = prepare_params(torch_params)   # bf16 weights, one-time conversion

    mean_b, log_std_b = policy_forward(state, kparams_bf16)
    action_b, log_prob_b, _, _, _ = policy_evaluate(state, z, kparams_bf16)
    jax.block_until_ready((mean_b, log_std_b, action_b, log_prob_b))

    ref_mean_s, ref_log_std_s = _reference_forward(state, torch_params)
    ref_act_s, ref_logp_s, _, _ = _reference_evaluate(state, z, torch_params)
    assert jnp.allclose(mean_b, ref_mean_s, atol=3e-2), "bf16 mean mismatch"
    assert jnp.allclose(log_std_b, ref_log_std_s, atol=3e-2), "bf16 log_std mismatch"
    assert jnp.allclose(action_b, ref_act_s, atol=5e-2), "bf16 action mismatch"
    assert jnp.allclose(log_prob_b, ref_logp_s, atol=1e-1), "bf16 log_prob mismatch"

    print("KERNEL_OK")
</pallas_src>

<mosaic_0001>
module attributes {stable_mosaic.version = 11 : i64} {
  func.func @_policy_fwd_kernel(%arg0: i32, %arg1: memref<24x4xf32, #tpu.memory_space<vmem>>, %arg2: memref<4x128xf32, #tpu.memory_space<vmem>>, %arg3: memref<1x128xf32, #tpu.memory_space<vmem>>, %arg4: memref<128x128xf32, #tpu.memory_space<vmem>>, %arg5: memref<1x128xf32, #tpu.memory_space<vmem>>, %arg6: memref<128x4xf32, #tpu.memory_space<vmem>>, %arg7: memref<1x4xf32, #tpu.memory_space<vmem>>, %arg8: memref<24x2xf32, #tpu.memory_space<vmem>>, %arg9: memref<24x2xf32, #tpu.memory_space<vmem>>) attributes {dimension_semantics = [#tpu.dimension_semantics<parallel>], iteration_bounds = array<i64: 2>, scalar_prefetch = 0 : i64, scratch_operands = 0 : i64, tpu.core_type = #tpu.core_type<tc>, window_params = [{transform_indices = @transform_0, window_bounds = array<i64: 24, 4>}, {pipeline_mode = #tpu.pipeline_mode<synchronous>, transform_indices = @transform_1, window_bounds = array<i64: 4, 128>}, {pipeline_mode = #tpu.pipeline_mode<synchronous>, transform_indices = @transform_2, window_bounds = array<i64: 1, 128>}, {pipeline_mode = #tpu.pipeline_mode<synchronous>, transform_indices = @transform_3, window_bounds = array<i64: 128, 128>}, {pipeline_mode = #tpu.pipeline_mode<synchronous>, transform_indices = @transform_4, window_bounds = array<i64: 1, 128>}, {pipeline_mode = #tpu.pipeline_mode<synchronous>, transform_indices = @transform_5, window_bounds = array<i64: 128, 4>}, {pipeline_mode = #tpu.pipeline_mode<synchronous>, transform_indices = @transform_6, window_bounds = array<i64: 1, 4>}, {transform_indices = @transform_7, window_bounds = array<i64: 24, 2>}, {transform_indices = @transform_8, window_bounds = array<i64: 24, 2>}]} {
    %c0 = arith.constant 0 : index
    %c0_0 = arith.constant 0 : index
    %0 = vector.load %arg1[%c0, %c0_0] : memref<24x4xf32, #tpu.memory_space<vmem>>, vector<24x4xf32>
    %c0_1 = arith.constant 0 : index
    %c0_2 = arith.constant 0 : index
    %1 = vector.load %arg2[%c0_1, %c0_2] : memref<4x128xf32, #tpu.memory_space<vmem>>, vector<4x128xf32>
    %c0_3 = arith.constant 0 : index
    %c0_4 = arith.constant 0 : index
    %2 = vector.load %arg3[%c0_3, %c0_4] : memref<1x128xf32, #tpu.memory_space<vmem>>, vector<1x128xf32>
    %c0_5 = arith.constant 0 : index
    %c0_6 = arith.constant 0 : index
    %3 = vector.load %arg4[%c0_5, %c0_6] : memref<128x128xf32, #tpu.memory_space<vmem>>, vector<128x128xf32>
    %c0_7 = arith.constant 0 : index
    %c0_8 = arith.constant 0 : index
    %4 = vector.load %arg5[%c0_7, %c0_8] : memref<1x128xf32, #tpu.memory_space<vmem>>, vector<1x128xf32>
    %c0_9 = arith.constant 0 : index
    %c0_10 = arith.constant 0 : index
    %5 = vector.load %arg6[%c0_9, %c0_10] : memref<128x4xf32, #tpu.memory_space<vmem>>, vector<128x4xf32>
    %c0_11 = arith.constant 0 : index
    %c0_12 = arith.constant 0 : index
    %6 = vector.load %arg7[%c0_11, %c0_12] : memref<1x4xf32, #tpu.memory_space<vmem>>, vector<1x4xf32>
    %7 = vector.extract_strided_slice %0 {offsets = [0, 0], sizes = [24, 1], strides = [1, 1]} : vector<24x4xf32> to vector<24x1xf32>
    %8 = vector.extract_strided_slice %1 {offsets = [0, 0], sizes = [1, 128], strides = [1, 1]} : vector<4x128xf32> to vector<1x128xf32>
    %9 = vector.broadcast %7 : vector<24x1xf32> to vector<24x128xf32>
    %10 = vector.broadcast %8 : vector<1x128xf32> to vector<24x128xf32>
    %11 = arith.mulf %9, %10 : vector<24x128xf32>
    %12 = vector.broadcast %2 : vector<1x128xf32> to vector<24x128xf32>
    %13 = arith.addf %12, %11 : vector<24x128xf32>
    %14 = vector.extract_strided_slice %0 {offsets = [0, 1], sizes = [24, 1], strides = [1, 1]} : vector<24x4xf32> to vector<24x1xf32>
    %15 = vector.extract_strided_slice %1 {offsets = [1, 0], sizes = [1, 128], strides = [1, 1]} : vector<4x128xf32> to vector<1x128xf32>
    %16 = vector.broadcast %14 : vector<24x1xf32> to vector<24x128xf32>
    %17 = vector.broadcast %15 : vector<1x128xf32> to vector<24x128xf32>
    %18 = arith.mulf %16, %17 : vector<24x128xf32>
    %19 = arith.addf %13, %18 : vector<24x128xf32>
    %20 = vector.extract_strided_slice %0 {offsets = [0, 2], sizes = [24, 1], strides = [1, 1]} : vector<24x4xf32> to vector<24x1xf32>
    %21 = vector.extract_strided_slice %1 {offsets = [2, 0], sizes = [1, 128], strides = [1, 1]} : vector<4x128xf32> to vector<1x128xf32>
    %22 = vector.broadcast %20 : vector<24x1xf32> to vector<24x128xf32>
    %23 = vector.broadcast %21 : vector<1x128xf32> to vector<24x128xf32>
    %24 = arith.mulf %22, %23 : vector<24x128xf32>
    %25 = arith.addf %19, %24 : vector<24x128xf32>
    %26 = vector.extract_strided_slice %0 {offsets = [0, 3], sizes = [24, 1], strides = [1, 1]} : vector<24x4xf32> to vector<24x1xf32>
    %27 = vector.extract_strided_slice %1 {offsets = [3, 0], sizes = [1, 128], strides = [1, 1]} : vector<4x128xf32> to vector<1x128xf32>
    %28 = vector.broadcast %26 : vector<24x1xf32> to vector<24x128xf32>
    %29 = vector.broadcast %27 : vector<1x128xf32> to vector<24x128xf32>
    %30 = arith.mulf %28, %29 : vector<24x128xf32>
    %31 = arith.addf %25, %30 : vector<24x128xf32>
    %cst = arith.constant 0.000000e+00 : f32
    %32 = vector.broadcast %cst : f32 to vector<24x128xf32>
    %33 = arith.maximumf %31, %32 : vector<24x128xf32>
    %cst_13 = arith.constant dense<0.000000e+00> : vector<24x128xf32>
    %34 = tpu.matmul %33, %3, %cst_13 {dimension_numbers = #tpu.dot_dimension_numbers<[1], [0], [0], [1], [0, 0, 1, 1], [], []>} : vector<24x128xf32>, vector<128x128xf32>, vector<24x128xf32> -> vector<24x128xf32>
    %35 = vector.broadcast %4 : vector<1x128xf32> to vector<24x128xf32>
    %36 = arith.addf %34, %35 : vector<24x128xf32>
    %cst_14 = arith.constant 0.000000e+00 : f32
    %37 = vector.broadcast %cst_14 : f32 to vector<24x128xf32>
    %38 = arith.maximumf %36, %37 : vector<24x128xf32>
    %cst_15 = arith.constant dense<0.000000e+00> : vector<24x4xf32>
    %39 = tpu.matmul %38, %5, %cst_15 {dimension_numbers = #tpu.dot_dimension_numbers<[1], [0], [0], [1], [0, 0, 1, 1], [], []>} : vector<24x128xf32>, vector<128x4xf32>, vector<24x4xf32> -> vector<24x4xf32>
    %40 = vector.broadcast %6 : vector<1x4xf32> to vector<24x4xf32>
    %41 = arith.addf %39, %40 : vector<24x4xf32>
    %42 = vector.extract_strided_slice %41 {offsets = [0, 0], sizes = [24, 2], strides = [1, 1]} : vector<24x4xf32> to vector<24x2xf32>
    %c0_16 = arith.constant 0 : index
    %c0_17 = arith.constant 0 : index
    %43 = vector.load %arg8[%c0_16, %c0_17] : memref<24x2xf32, #tpu.memory_space<vmem>>, vector<24x2xf32>
    tpu.vector_store %arg8[%c0_16, %c0_17], %42 {strides = array<i32>} : memref<24x2xf32, #tpu.memory_space<vmem>>, vector<24x2xf32>,
    %44 = vector.extract_strided_slice %41 {offsets = [0, 2], sizes = [24, 2], strides = [1, 1]} : vector<24x4xf32> to vector<24x2xf32>
    %cst_18 = arith.constant -2.000000e+01 : f32
    %cst_19 = arith.constant 2.000000e+00 : f32
    %45 = vector.broadcast %cst_18 : f32 to vector<24x2xf32>
    %46 = arith.maximumf %45, %44 : vector<24x2xf32>
    %47 = vector.broadcast %cst_19 : f32 to vector<24x2xf32>
    %48 = arith.minimumf %47, %46 : vector<24x2xf32>
    %c0_20 = arith.constant 0 : index
    %c0_21 = arith.constant 0 : index
    %49 = vector.load %arg9[%c0_20, %c0_21] : memref<24x2xf32, #tpu.memory_space<vmem>>, vector<24x2xf32>
    tpu.vector_store %arg9[%c0_20, %c0_21], %48 {strides = array<i32>} : memref<24x2xf32, #tpu.memory_space<vmem>>, vector<24x2xf32>,
    return
  }
  func.func @transform_0(%arg0: i32) -> (i32, i32) {
    %c0_i32 = arith.constant 0 : i32
    %c0_i32_0 = arith.constant 0 : i32
    return %arg0, %c0_i32 : i32, i32
  }
  func.func @transform_1(%arg0: i32) -> (i32, i32) {
    %c0_i32 = arith.constant 0 : i32
    %c0_i32_0 = arith.constant 0 : i32
    %c0_i32_1 = arith.constant 0 : i32
    return %c0_i32, %c0_i32_0 : i32, i32
  }
  func.func @transform_2(%arg0: i32) -> (i32, i32) {
    %c0_i32 = arith.constant 0 : i32
    %c0_i32_0 = arith.constant 0 : i32
    %c0_i32_1 = arith.constant 0 : i32
    return %c0_i32, %c0_i32_0 : i32, i32
  }
  func.func @transform_3(%arg0: i32) -> (i32, i32) {
    %c0_i32 = arith.constant 0 : i32
    %c0_i32_0 = arith.constant 0 : i32
    %c0_i32_1 = arith.constant 0 : i32
    return %c0_i32, %c0_i32_0 : i32, i32
  }
  func.func @transform_4(%arg0: i32) -> (i32, i32) {
    %c0_i32 = arith.constant 0 : i32
    %c0_i32_0 = arith.constant 0 : i32
    %c0_i32_1 = arith.constant 0 : i32
    return %c0_i32, %c0_i32_0 : i32, i32
  }
  func.func @transform_5(%arg0: i32) -> (i32, i32) {
    %c0_i32 = arith.constant 0 : i32
    %c0_i32_0 = arith.constant 0 : i32
    %c0_i32_1 = arith.constant 0 : i32
    return %c0_i32, %c0_i32_0 : i32, i32
  }
  func.func @transform_6(%arg0: i32) -> (i32, i32) {
    %c0_i32 = arith.constant 0 : i32
    %c0_i32_0 = arith.constant 0 : i32
    %c0_i32_1 = arith.constant 0 : i32
    return %c0_i32, %c0_i32_0 : i32, i32
  }
  func.func @transform_7(%arg0: i32) -> (i32, i32) {
    %c0_i32 = arith.constant 0 : i32
    %c0_i32_0 = arith.constant 0 : i32
    return %arg0, %c0_i32 : i32, i32
  }
  func.func @transform_8(%arg0: i32) -> (i32, i32) {
    %c0_i32 = arith.constant 0 : i32
    %c0_i32_0 = arith.constant 0 : i32
    return %arg0, %c0_i32 : i32, i32
  }
}

</mosaic_0001>

<llo_original>
// kernel: policy_forward.1
$region0: #{policy_forward.1}
  #allocation0 [shape = 'u32[]', space=smem, size = 0x4, offset = 0x4, fixed_abs, tag = 'smem constant byte address 0x4 - core index']
  #allocation1 [shape = 'u32[72,128]{1,0:T(1,128)}', space=vmem, size = 0x9000, scoped, tag = 'internal scratch']
  %s0 = inlined_call_operand.vmem [shape: f32[40,4], index: 0, kind: input, shape index: {}]
  %s1 = inlined_call_operand.vmem [shape: f32[4,128], index: 1, kind: input, shape index: {}]
  %s2 = inlined_call_operand.vmem [shape: f32[1,128], index: 2, kind: input, shape index: {}]
  %s3 = inlined_call_operand.vmem [shape: f32[128,128], index: 3, kind: input, shape index: {}]
  %s4 = inlined_call_operand.vmem [shape: f32[1,128], index: 4, kind: input, shape index: {}]
  %s5 = inlined_call_operand.vmem [shape: f32[128,4], index: 5, kind: input, shape index: {}]
  %s6 = inlined_call_operand.vmem [shape: f32[1,4], index: 6, kind: input, shape index: {}]
  %s7 = inlined_call_operand.vmem [shape: f32[40,2], index: 7, kind: output, shape index: {0}]
  %s8 = inlined_call_operand.vmem [shape: f32[40,2], index: 8, kind: output, shape index: {1}]
  %9 = xla_tuple %s7, %s8
  %s10 = sld [smem:[#allocation0]]
  $region165: #{policy_forward.1} parent=0
    _
  %s12 = ssub.s32 1, %s10
  %s13 = scalar_select 0, %s12, %s10
  $region1: #{policy_forward.1} parent=0
    #allocation2 [shape = 'u8[24576]{0}', space=vmem, size = 0x6000, scoped, tag = 'output window, operand 0']
    #allocation3 [shape = 'u8[24576]{0}', space=vmem, size = 0x6000, scoped, tag = 'output window, operand 1']
    loop: start=0, step=1, limit=4
    $region2: #{policy_forward.1} parent=1 // loop_pre_header
      _
    $region3: #{policy_forward.1} parent=1 // loop_header
      %s15 = sphi 0, %s19
      %p16 = scmp.ge.s32.totalorder %s15, 4
      %s25 = sphi 0, %s27
      %s28 = sphi 0, %s25
      %s29 = sphi 0, %s28
      %s45 = sphi 0, %s29
      %s49 = sphi 0, %s49
      %s51 = sphi 0, %s49
      %s52 = sphi 0, %s51
      %s66 = sphi 0, %s52
      %s70 = sphi 0, %s70
      %s72 = sphi 0, %s70
      %s73 = sphi 0, %s72
      %s87 = sphi 0, %s73
      %s91 = sphi 0, %s91
      %s93 = sphi 0, %s91
      %s94 = sphi 0, %s93
      %s108 = sphi 0, %s94
      %s112 = sphi 0, %s112
      %s114 = sphi 0, %s112
      %s115 = sphi 0, %s114
      %s129 = sphi 0, %s115
      %s133 = sphi 0, %s133
      %s135 = sphi 0, %s133
      %s136 = sphi 0, %s135
      %s150 = sphi 0, %s136
      %s154 = sphi 0, %s154
      %s156 = sphi 0, %s154
      %s157 = sphi 0, %s156
      %s171 = sphi 0, %s157
      %s177 = sphi 0, %s179
      %s180 = sphi 0, %s177
      %s181 = sphi 0, %s180
      %s197 = sphi 0, %s181
      %s203 = sphi 0, %s205
      %s206 = sphi 0, %s203
      %s207 = sphi 0, %s206
      %s223 = sphi 0, %s207
    $region4: #{policy_forward.1} parent=1 // loop_header_branch
      %18 = sbr.rel (%p16) target = $region8
    $region5: #{policy_forward.1} parent=1 // loop_body
      %s20 = ssub.s32 %s15, 1
      %s21 = ssub.s32 %s15, 2
      %s22 = sadd.s32 %s15, 1
      %s23 = ssub.s32 %s15, %s22
      %p24 = scmp.eq.s32.totalorder %s23, 0
      %s26 = sadd.s32 %s25, 1
      %s27 = scalar_select %p24, %s25, %s26
      %p30 = pneg %p24
      %p31 = scmp.eq.s32.totalorder %s15, 1
      %p32 = por %p30, %p31
      %p33 = scmp.ne.s32.totalorder %s25, %s28
      %p34 = scmp.eq.s32.totalorder %s15, 0
      %p35 = por %p33, %p34
      %p36 = scmp.ne.s32.totalorder %s25, %s28
      %p37 = scmp.eq.s32.totalorder %s20, 1
      %p38 = por %p36, %p37
      %p39 = scmp.ne.s32.totalorder %s28, %s29
      %p40 = scmp.eq.s32.totalorder %s20, 0
      %p41 = por %p39, %p40
      %p42 = scmp.ne.s32.totalorder %s28, %s29
      %p43 = scmp.eq.s32.totalorder %s21, 1
      %p44 = por %p42, %p43
      %p46 = scmp.ne.s32.totalorder %s29, %s45
      %p47 = scmp.eq.s32.totalorder %s21, 0
      %p48 = por %p46, %p47
      %s50 = sadd.s32 %s49, 1
      %p53 = scmp.eq.s32.totalorder %s15, 1
      %p54 = scmp.ne.s32.totalorder %s49, %s51
      %p55 = scmp.eq.s32.totalorder %s15, 0
      %p56 = por %p54, %p55
      %p57 = scmp.ne.s32.totalorder %s49, %s51
      %p58 = scmp.eq.s32.totalorder %s20, 1
      %p59 = por %p57, %p58
      %p60 = scmp.ne.s32.totalorder %s51, %s52
      %p61 = scmp.eq.s32.totalorder %s20, 0
      %p62 = por %p60, %p61
      %p63 = scmp.ne.s32.totalorder %s51, %s52
      %p64 = scmp.eq.s32.totalorder %s21, 1
      %p65 = por %p63, %p64
      %p67 = scmp.ne.s32.totalorder %s52, %s66
      %p68 = scmp.eq.s32.totalorder %s21, 0
      %p69 = por %p67, %p68
      %s71 = sadd.s32 %s70, 1
      %p74 = scmp.eq.s32.totalorder %s15, 1
      %p75 = scmp.ne.s32.totalorder %s70, %s72
      %p76 = scmp.eq.s32.totalorder %s15, 0
      %p77 = por %p75, %p76
      %p78 = scmp.ne.s32.totalorder %s70, %s72
      %p79 = scmp.eq.s32.totalorder %s20, 1
      %p80 = por %p78, %p79
      %p81 = scmp.ne.s32.totalorder %s72, %s73
      %p82 = scmp.eq.s32.totalorder %s20, 0
      %p83 = por %p81, %p82
      %p84 = scmp.ne.s32.totalorder %s72, %s73
      %p85 = scmp.eq.s32.totalorder %s21, 1
      %p86 = por %p84, %p85
      %p88 = scmp.ne.s32.totalorder %s73, %s87
      %p89 = scmp.eq.s32.totalorder %s21, 0
      %p90 = por %p88, %p89
      %s92 = sadd.s32 %s91, 1
      %p95 = scmp.eq.s32.totalorder %s15, 1
      %p96 = scmp.ne.s32.totalorder %s91, %s93
      %p97 = scmp.eq.s32.totalorder %s15, 0
      %p98 = por %p96, %p97
      %p99 = scmp.ne.s32.totalorder %s91, %s93
      %p100 = scmp.eq.s32.totalorder %s20, 1
      %p101 = por %p99, %p100
      %p102 = scmp.ne.s32.totalorder %s93, %s94
      %p103 = scmp.eq.s32.totalorder %s20, 0
      %p104 = por %p102, %p103
      %p105 = scmp.ne.s32.totalorder %s93, %s94
      %p106 = scmp.eq.s32.totalorder %s21, 1
      %p107 = por %p105, %p106
      %p109 = scmp.ne.s32.totalorder %s94, %s108
      %p110 = scmp.eq.s32.totalorder %s21, 0
      %p111 = por %p109, %p110
      %s113 = sadd.s32 %s112, 1
      %p116 = scmp.eq.s32.totalorder %s15, 1
      %p117 = scmp.ne.s32.totalorder %s112, %s114
      %p118 = scmp.eq.s32.totalorder %s15, 0
      %p119 = por %p117, %p118
      %p120 = scmp.ne.s32.totalorder %s112, %s114
      %p121 = scmp.eq.s32.totalorder %s20, 1
      %p122 = por %p120, %p121
      %p123 = scmp.ne.s32.totalorder %s114, %s115
      %p124 = scmp.eq.s32.totalorder %s20, 0
      %p125 = por %p123, %p124
      %p126 = scmp.ne.s32.totalorder %s114, %s115
      %p127 = scmp.eq.s32.totalorder %s21, 1
      %p128 = por %p126, %p127
      %p130 = scmp.ne.s32.totalorder %s115, %s129
      %p131 = scmp.eq.s32.totalorder %s21, 0
      %p132 = por %p130, %p131
      %s134 = sadd.s32 %s133, 1
      %p137 = scmp.eq.s32.totalorder %s15, 1
      %p138 = scmp.ne.s32.totalorder %s133, %s135
      %p139 = scmp.eq.s32.totalorder %s15, 0
      %p140 = por %p138, %p139
      %p141 = scmp.ne.s32.totalorder %s133, %s135
      %p142 = scmp.eq.s32.totalorder %s20, 1
      %p143 = por %p141, %p142
      %p144 = scmp.ne.s32.totalorder %s135, %s136
      %p145 = scmp.eq.s32.totalorder %s20, 0
      %p146 = por %p144, %p145
      %p147 = scmp.ne.s32.totalorder %s135, %s136
      %p148 = scmp.eq.s32.totalorder %s21, 1
      %p149 = por %p147, %p148
      %p151 = scmp.ne.s32.totalorder %s136, %s150
      %p152 = scmp.eq.s32.totalorder %s21, 0
      %p153 = por %p151, %p152
      %s155 = sadd.s32 %s154, 1
      %p158 = scmp.eq.s32.totalorder %s15, 1
      %p159 = scmp.ne.s32.totalorder %s154, %s156
      %p160 = scmp.eq.s32.totalorder %s15, 0
      %p161 = por %p159, %p160
      %p162 = scmp.ne.s32.totalorder %s154, %s156
      %p163 = scmp.eq.s32.totalorder %s20, 1
      %p164 = por %p162, %p163
      %p165 = scmp.ne.s32.totalorder %s156, %s157
      %p166 = scmp.eq.s32.totalorder %s20, 0
      %p167 = por %p165, %p166
      %p168 = scmp.ne.s32.totalorder %s156, %s157
      %p169 = scmp.eq.s32.totalorder %s21, 1
      %p170 = por %p168, %p169
      %p172 = scmp.ne.s32.totalorder %s157, %s171
      %p173 = scmp.eq.s32.totalorder %s21, 0
      %p174 = por %p172, %p173
      %s175 = ssub.s32 %s15, %s22
      %p176 = scmp.eq.s32.totalorder %s175, 0
      %s178 = sadd.s32 %s177, 1
      %s179 = scalar_select %p176, %s177, %s178
      %p182 = pneg %p176
      %p183 = scmp.eq.s32.totalorder %s15, 1
      %p184 = por %p182, %p183
      %p185 = scmp.ne.s32.totalorder %s177, %s180
      %p186 = scmp.eq.s32.totalorder %s15, 0
      %p187 = por %p185, %p186
      %p188 = scmp.ne.s32.totalorder %s177, %s180
      %p189 = scmp.eq.s32.totalorder %s20, 1
      %p190 = por %p188, %p189
      %p191 = scmp.ne.s32.totalorder %s180, %s181
      %p192 = scmp.eq.s32.totalorder %s20, 0
      %p193 = por %p191, %p192
      %p194 = scmp.ne.s32.totalorder %s180, %s181
      %p195 = scmp.eq.s32.totalorder %s21, 1
      %p196 = por %p194, %p195
      %p198 = scmp.ne.s32.totalorder %s181, %s197
      %p199 = scmp.eq.s32.totalorder %s21, 0
      %p200 = por %p198, %p199
      %s201 = ssub.s32 %s15, %s22
      %p202 = scmp.eq.s32.totalorder %s201, 0
      %s204 = sadd.s32 %s203, 1
      %s205 = scalar_select %p202, %s203, %s204
      %p208 = pneg %p202
      %p209 = scmp.eq.s32.totalorder %s15, 1
      %p210 = por %p208, %p209
      %p211 = scmp.ne.s32.totalorder %s203, %s206
      %p212 = scmp.eq.s32.totalorder %s15, 0
      %p213 = por %p211, %p212
      %p214 = scmp.ne.s32.totalorder %s203, %s206
      %p215 = scmp.eq.s32.totalorder %s20, 1
      %p216 = por %p214, %p215
      %p217 = scmp.ne.s32.totalorder %s206, %s207
      %p218 = scmp.eq.s32.totalorder %s20, 0
      %p219 = por %p217, %p218
      %p220 = scmp.ne.s32.totalorder %s206, %s207
      %p221 = scmp.eq.s32.totalorder %s21, 1
      %p222 = por %p220, %p221
      %p224 = scmp.ne.s32.totalorder %s207, %s223
      %p225 = scmp.eq.s32.totalorder %s21, 0
      %p226 = por %p224, %p225
      %p227 = scmp.le.s32.totalorder 1, %s15
      %p228 = scmp.lt.s32.totalorder %s15, 3
      %p229 = pnand %p227, %p228
      %p230 = pneg %p229
      // Predicated region
      $region9: #{policy_forward.1} parent=5 // pred_check
        _
      $region10: #{policy_forward.1} parent=5 // pred_check_branch
        %232 = sbr.rel (%p229) target = $region12
      $region11: #{policy_forward.1} parent=5 // pred_region
        %s233 = ssub.s32 %s15, 1
        // Predicated region
        $region13: #{policy_forward.1} parent=11 // pred_check
          %p234 = pneg %p62
        $region14: #{policy_forward.1} parent=11 // pred_check_branch
          %236 = sbr.rel (%p234) target = $region16
        $region15: #{policy_forward.1} parent=11 // pred_region
          _
        $region16: #{policy_forward.1} parent=11 // pred_fallthru
          _
        // Predicated region
        $region17: #{policy_forward.1} parent=11 // pred_check
          %p237 = pneg %p83
        $region18: #{policy_forward.1} parent=11 // pred_check_branch
          %239 = sbr.rel (%p237) target = $region20
        $region19: #{policy_forward.1} parent=11 // pred_region
          _
        $region20: #{policy_forward.1} parent=11 // pred_fallthru
          _
        // Predicated region
        $region21: #{policy_forward.1} parent=11 // pred_check
          %p240 = pneg %p104
        $region22: #{policy_forward.1} parent=11 // pred_check_branch
          %242 = sbr.rel (%p240) target = $region24
        $region23: #{policy_forward.1} parent=11 // pred_region
          _
        $region24: #{policy_forward.1} parent=11 // pred_fallthru
          _
        // Predicated region
        $region25: #{policy_forward.1} parent=11 // pred_check
          %p243 = pneg %p125
        $region26: #{policy_forward.1} parent=11 // pred_check_branch
          %245 = sbr.rel (%p243) target = $region28
        $region27: #{policy_forward.1} parent=11 // pred_region
          _
        $region28: #{policy_forward.1} parent=11 // pred_fallthru
          _
        // Predicated region
        $region29: #{policy_forward.1} parent=11 // pred_check
          %p246 = pneg %p146
        $region30: #{policy_forward.1} parent=11 // pred_check_branch
          %248 = sbr.rel (%p246) target = $region32
        $region31: #{policy_forward.1} parent=11 // pred_region
          _
        $region32: #{policy_forward.1} parent=11 // pred_fallthru
          _
        // Predicated region
        $region33: #{policy_forward.1} parent=11 // pred_check
          %p249 = pneg %p167
        $region34: #{policy_forward.1} parent=11 // pred_check_branch
          %251 = sbr.rel (%p249) target = $region36
        $region35: #{policy_forward.1} parent=11 // pred_region
          _
        $region36: #{policy_forward.1} parent=11 // pred_fallthru
          _
      $region12: #{policy_forward.1} parent=5 // pred_fallthru
        _
      %p252 = scmp.lt.s32.totalorder %s15, 2
      // Predicated region
      $region37: #{policy_forward.1} parent=5 // pred_check
        %p253 = pneg %p252
      $region38: #{policy_forward.1} parent=5 // pred_check_branch
        %255 = sbr.rel (%p253) target = $region40
      $region39: #{policy_forward.1} parent=5 // pred_region
        // Predicated region
        $region41: #{policy_forward.1} parent=39 // pred_check
          %p256 = pneg %p35
        $region42: #{policy_forward.1} parent=39 // pred_check_branch
          %258 = sbr.rel (%p256) target = $region44
        $region43: #{policy_forward.1} parent=39 // pred_region
          %s259 = smul.u32 3, %s15
          %s260 = ssub.s32 5, %s259
          %p261 = scmp.lt.s32.totalorder %s260, 3
          %s262 = scalar_select %p261, %s260, 3
          %s263 = smul.u32 8, %s262
          %p264 = scmp.lt.s32.totalorder %s259, 4
          %s265 = scalar_select %p264, %s259, 4
          %s266 = smul.addr %s265, 8
          %s267 = scalar_lea.vmem %s0, %s266
          %s268 = smul.u32 3, %s15
          %s269 = ssub.s32 5, %s268
          %p270 = scmp.lt.s32.totalorder %s269, 3
          %s271 = scalar_select %p270, %s269, 3
          %s272 = smul.u32 8, %s271
        $region44: #{policy_forward.1} parent=39 // pred_fallthru
          _
      $region40: #{policy_forward.1} parent=5 // pred_fallthru
        _
      %p273 = scmp.le.s32.totalorder 1, %s15
      %p274 = scmp.lt.s32.totalorder %s15, 3
      %p275 = pnand %p273, %p274
      %p276 = pneg %p275
      // Predicated region
      $region45: #{policy_forward.1} parent=5 // pred_check
        _
      $region46: #{policy_forward.1} parent=5 // pred_check_branch
        %278 = sbr.rel (%p275) target = $region48
      $region47: #{policy_forward.1} parent=5 // pred_region
        %s279 = ssub.s32 %s15, 1
        %s280 = smul.u32 3, %s20
        %s281 = ssub.s32 5, %s280
        %p282 = scmp.lt.s32.totalorder %s281, 3
        %s283 = scalar_select %p282, %s281, 3
        %s284 = smul.u32 8, %s283
        %p285 = scmp.lt.s32.totalorder %s280, 4
        %s286 = scalar_select %p285, %s280, 4
        %s287 = smul.addr %s286, 8
        %s288 = scalar_lea.vmem %s0, %s287
        %p289 = pneg %p41
        %p290 = pneg %p38
        %p291 = pneg %p62
        %p292 = pneg %p59
        %p293 = pneg %p83
        %p294 = pneg %p80
        %p295 = pneg %p104
        %p296 = pneg %p101
        %p297 = pneg %p125
        %p298 = pneg %p122
        %p299 = pneg %p146
        %p300 = pneg %p143
        %p301 = pneg %p167
        %p302 = pneg %p164
        %p303 = pneg %p193
        %p304 = pneg %p190
        %s305 = sand.u32 %s180, 1
        %s306 = sand.u32 %s180, 1
        %s307 = smul.addr %s306, 24
        %s308 = scalar_lea.vmem [#allocation2], %s307
        %p309 = pneg %p219
        %p310 = pneg %p216
        %s311 = sand.u32 %s206, 1
        %s312 = sand.u32 %s206, 1
        %s313 = smul.addr %s312, 24
        %s314 = scalar_lea.vmem [#allocation3], %s313
        %s315 = smul.u32 3, %s20
        %s316 = ssub.s32 5, %s315
        %p317 = scmp.lt.s32.totalorder %s316, 3
        %s318 = scalar_select %p317, %s316, 3
        %s319 = smul.u32 8, %s318
        %p320 = scmp.lt.s32.totalorder %s315, 4
        %s321 = scalar_select %p320, %s315, 4
        %s322 = smul.addr %s321, 8
        %s323 = scalar_lea.vmem %s0, %s322
        %s324 = smul.u32 3, %s20
        %s325 = ssub.s32 5, %s324
        %p326 = scmp.lt.s32.totalorder %s325, 3
        %s327 = scalar_select %p326, %s325, 3
        %s328 = smul.u32 8, %s327
        %s329 = smul.u32 3, %s20
        %s330 = ssub.s32 5, %s329
        %p331 = scmp.lt.s32.totalorder %s330, 3
        %s332 = scalar_select %p331, %s330, 3
        %s333 = smul.u32 8, %s332
        %s334 = smul.u32 3, %s20
        %s335 = ssub.s32 5, %s334
        %p336 = scmp.lt.s32.totalorder %s335, 3
        %s337 = scalar_select %p336, %s335, 3
        %s338 = smul.u32 8, %s337
        %v339 = vld [vmem:[%s323] sm:$0xff]
        %v340 = vld [vmem:[%s323 + $0x8] sm:$0xff]
        %v341 = vld [vmem:[%s323 + $0x10] sm:$0xff]
        %v342 = vld [vmem:[%s1] sm:$0xf]
        %v343 = vld [vmem:[%s2] sm:$0x1]
        %v344 = vld [vmem:[%s3] sm:$0xff]
        %v345 = vld [vmem:[%s3 + $0x8] sm:$0xff]
        %v346 = vld [vmem:[%s3 + $0x10] sm:$0xff]
        %v347 = vld [vmem:[%s3 + $0x18] sm:$0xff]
        %v348 = vld [vmem:[%s3 + $0x20] sm:$0xff]
        %v349 = vld [vmem:[%s3 + $0x28] sm:$0xff]
        %v350 = vld [vmem:[%s3 + $0x30] sm:$0xff]
        %v351 = vld [vmem:[%s3 + $0x38] sm:$0xff]
        %v352 = vld [vmem:[%s3 + $0x40] sm:$0xff]
        %v353 = vld [vmem:[%s3 + $0x48] sm:$0xff]
        %v354 = vld [vmem:[%s3 + $0x50] sm:$0xff]
        %v355 = vld [vmem:[%s3 + $0x58] sm:$0xff]
        %v356 = vld [vmem:[%s3 + $0x60] sm:$0xff]
        %v357 = vld [vmem:[%s3 + $0x68] sm:$0xff]
        %v358 = vld [vmem:[%s3 + $0x70] sm:$0xff]
        %v359 = vld [vmem:[%s3 + $0x78] sm:$0xff]
        %v360 = vld [vmem:[%s4] sm:$0x1]
        %v361 = vld [vmem:[%s5] sm:$0xff]
        %v362 = vld [vmem:[%s5 + $0x8] sm:$0xff]
        %v363 = vld [vmem:[%s5 + $0x10] sm:$0xff]
        %v364 = vld [vmem:[%s5 + $0x18] sm:$0xff]
        %v365 = vld [vmem:[%s5 + $0x20] sm:$0xff]
        %v366 = vld [vmem:[%s5 + $0x28] sm:$0xff]
        %v367 = vld [vmem:[%s5 + $0x30] sm:$0xff]
        %v368 = vld [vmem:[%s5 + $0x38] sm:$0xff]
        %v369 = vld [vmem:[%s5 + $0x40] sm:$0xff]
        %v370 = vld [vmem:[%s5 + $0x48] sm:$0xff]
        %v371 = vld [vmem:[%s5 + $0x50] sm:$0xff]
        %v372 = vld [vmem:[%s5 + $0x58] sm:$0xff]
        %v373 = vld [vmem:[%s5 + $0x60] sm:$0xff]
        %v374 = vld [vmem:[%s5 + $0x68] sm:$0xff]
        %v375 = vld [vmem:[%s5 + $0x70] sm:$0xff]
        %v376 = vld [vmem:[%s5 + $0x78] sm:$0xff]
        %v377 = vld [vmem:[%s6] sm:$0x1]
        %379 = vset.pattern.permute.xlu0 0
        %380 = vperm.xlu0 %379, %v339
        %v381 = vpop.permute.xlu0 %380
        %384 = vset.pattern.permute.xlu0 0
        %385 = vperm.xlu0 %384, %v340
        %v386 = vpop.permute.xlu0 %385
        %389 = vset.pattern.permute.xlu0 0
        %390 = vperm.xlu0 %389, %v341
        %v391 = vpop.permute.xlu0 %390
        %v393 = vperm.slane %v342, 0
        %v394 = vmul.f32 %v381, %v393
        %v395 = vmul.f32 %v386, %v393
        %v396 = vmul.f32 %v391, %v393
        %v398 = vperm.slane %v343, 0
        %v400 = vadd.f32 %v398, %v394
        %v401 = vadd.f32 %v398, %v395
        %v402 = vadd.f32 %v398, %v396
        %403 = vset.pattern.permute.xlu0 1
        %404 = vperm.xlu0 %403, %v339
        %v405 = vpop.permute.xlu0 %404
        %407 = vset.pattern.permute.xlu0 1
        %408 = vperm.xlu0 %407, %v340
        %v409 = vpop.permute.xlu0 %408
        %411 = vset.pattern.permute.xlu0 1
        %412 = vperm.xlu0 %411, %v341
        %v413 = vpop.permute.xlu0 %412
        %v415 = vperm.slane %v342, 1
        %v416 = vmul.f32 %v405, %v415
        %v417 = vmul.f32 %v409, %v415
        %v418 = vmul.f32 %v413, %v415
        %v419 = vadd.f32 %v400, %v416
        %v420 = vadd.f32 %v401, %v417
        %v421 = vadd.f32 %v402, %v418
        %422 = vset.pattern.permute.xlu0 2
        %423 = vperm.xlu0 %422, %v339
        %v424 = vpop.permute.xlu0 %423
        %426 = vset.pattern.permute.xlu0 2
        %427 = vperm.xlu0 %426, %v340
        %v428 = vpop.permute.xlu0 %427
        %430 = vset.pattern.permute.xlu0 2
        %431 = vperm.xlu0 %430, %v341
        %v432 = vpop.permute.xlu0 %431
        %v434 = vperm.slane %v342, 2
        %v435 = vmul.f32 %v424, %v434
        %v436 = vmul.f32 %v428, %v434
        %v437 = vmul.f32 %v432, %v434
        %v438 = vadd.f32 %v419, %v435
        %v439 = vadd.f32 %v420, %v436
        %v440 = vadd.f32 %v421, %v437
        %441 = vset.pattern.permute.xlu0 3
        %442 = vperm.xlu0 %441, %v339
        %v443 = vpop.permute.xlu0 %442
        %445 = vset.pattern.permute.xlu0 3
        %446 = vperm.xlu0 %445, %v340
        %v447 = vpop.permute.xlu0 %446
        %449 = vset.pattern.permute.xlu0 3
        %450 = vperm.xlu0 %449, %v341
        %v451 = vpop.permute.xlu0 %450
        %v453 = vperm.slane %v342, 3
        %v454 = vmul.f32 %v443, %v453
        %v455 = vmul.f32 %v447, %v453
        %v456 = vmul.f32 %v451, %v453
        %v457 = vadd.f32 %v438, %v454
        %v458 = vadd.f32 %v439, %v455
        %v459 = vadd.f32 %v440, %v456
        %v460 = vmax.f32 %v457, 0.0
        %v461 = vmax.f32 %v458, 0.0
        %v462 = vmax.f32 %v459, 0.0
        %v464 = vperm.slane %v360, 0
        %466 = vmatpush.msra.mxu0 %v359
        %467 = vmatpush.msra.mxu0 %v358
        %468 = vmatpush.msra.mxu0 %v357
        %469 = vmatpush.msra.mxu0 %v356
        %470 = vmatpush.msra.mxu0 %v355
        %471 = vmatpush.msra.mxu0 %v354
        %472 = vmatpush.msra.mxu0 %v353
        %473 = vmatpush.msra.mxu0 %v352
        %474 = vmatpush.msra.mxu0 %v351
        %475 = vmatpush.msra.mxu0 %v350
        %476 = vmatpush.msra.mxu0 %v349
        %477 = vmatpush.msra.mxu0 %v348
        %478 = vmatpush.msra.mxu0 %v347
        %479 = vmatpush.msra.mxu0 %v346
        %480 = vmatpush.msra.mxu0 %v345
        %481 = vmatpush.msra.mxu0 %v344
        %482 = vmatmul.f32.gmra.mxu0 %v460
        %v483 = vpop.f32.mrf.mxu0
        %v484 = vadd.f32 %v464, %v483
        %485 = vmatmul.f32.gmra.mxu0 %v461
        %v486 = vpop.f32.mrf.mxu0
        %v487 = vadd.f32 %v464, %v486
        %488 = vmatmul.f32.gmra.mxu0 %v462
        %v489 = vpop.f32.mrf.mxu0
        %v490 = vadd.f32 %v464, %v489
        %491 = vdwg.mxu0
        %v492 = vmax.f32 %v484, 0.0
        %v493 = vmax.f32 %v487, 0.0
        %v494 = vmax.f32 %v490, 0.0
        %v496 = vperm.slane %v377, 0
        %498 = vmatpush.msra.mxu0 %v376
        %499 = vmatpush.msra.mxu0 %v375
        %500 = vmatpush.msra.mxu0 %v374
        %501 = vmatpush.msra.mxu0 %v373
        %502 = vmatpush.msra.mxu0 %v372
        %503 = vmatpush.msra.mxu0 %v371
        %504 = vmatpush.msra.mxu0 %v370
        %505 = vmatpush.msra.mxu0 %v369
        %506 = vmatpush.msra.mxu0 %v368
        %507 = vmatpush.msra.mxu0 %v367
        %508 = vmatpush.msra.mxu0 %v366
        %509 = vmatpush.msra.mxu0 %v365
        %510 = vmatpush.msra.mxu0 %v364
        %511 = vmatpush.msra.mxu0 %v363
        %512 = vmatpush.msra.mxu0 %v362
        %513 = vmatpush.msra.mxu0 %v361
        %514 = vmatmul.f32.gmra.mxu0 %v492
        %v515 = vpop.f32.mrf.mxu0
        %v516 = vadd.f32 %v496, %v515
        %517 = vmatmul.f32.gmra.mxu0 %v493
        %v518 = vpop.f32.mrf.mxu0
        %v519 = vadd.f32 %v496, %v518
        %520 = vmatmul.f32.gmra.mxu0 %v494
        %v521 = vpop.f32.mrf.mxu0
        %v522 = vadd.f32 %v496, %v521
        %523 = vdwg.mxu0
        %vm524 = vcmask 15360
        %525 = vst.msk [vmem:[%s308] sm:$0xff] %vm524, %v516
        %526 = vst.msk [vmem:[%s308 + $0x8] sm:$0xff] %vm524, %v519
        %527 = vst.msk [vmem:[%s308 + $0x10] sm:$0xff] %vm524, %v522
        %v528 = vmax.f32 %v516, -20.0
        %v529 = vmax.f32 %v519, -20.0
        %v530 = vmax.f32 %v522, -20.0
        %v531 = vmin.f32 %v528, 2.0
        %v532 = vmin.f32 %v529, 2.0
        %v533 = vmin.f32 %v530, 2.0
        %537 = vrot.lane.b32.xlu0 %v531, 126
        %v538 = vpop.permute.xlu0 %537
        %539 = vrot.lane.b32.xlu0 %v532, 126
        %v540 = vpop.permute.xlu0 %539
        %541 = vrot.lane.b32.xlu0 %v533, 126
        %v542 = vpop.permute.xlu0 %541
        %546 = vst.msk [vmem:[%s314] sm:$0xff] %vm524, %v538
        %547 = vst.msk [vmem:[%s314 + $0x8] sm:$0xff] %vm524, %v540
        %548 = vst.msk [vmem:[%s314 + $0x10] sm:$0xff] %vm524, %v542
        %s549 = sand.u32 %s180, 1
        %s550 = sand.u32 %s180, 1
        %s551 = smul.addr %s550, 24
        %s552 = scalar_lea.vmem [#allocation2], %s551
        %s553 = sand.u32 %s206, 1
        %s554 = sand.u32 %s206, 1
        %s555 = smul.addr %s554, 24
        %s556 = scalar_lea.vmem [#allocation3], %s555
        // Predicated region
        $region49: #{policy_forward.1} parent=47 // pred_check
          %p557 = pneg %p190
        $region50: #{policy_forward.1} parent=47 // pred_check_branch
          %559 = sbr.rel (%p557) target = $region52
        $region51: #{policy_forward.1} parent=47 // pred_region
          %s560 = smul.u32 3, %s20
          %s561 = ssub.s32 5, %s560
          %p562 = scmp.lt.s32.totalorder %s561, 3
          %s563 = scalar_select %p562, %s561, 3
          %s564 = smul.u32 8, %s563
          %p565 = scmp.ne.s32.totalorder 0, %s564
          %s566 = smul.addr %s560, 8
          %s567 = scalar_lea.vmem %s7, %s566
          // Predicated region
          $region53: #{policy_forward.1} parent=51 // pred_check
            %p568 = pneg %p565
          $region54: #{policy_forward.1} parent=51 // pred_check_branch
            %570 = sbr.rel (%p568) target = $region56
          $region55: #{policy_forward.1} parent=51 // pred_region
            // Predicated region
            $region57: #{policy_forward.1} parent=55 // pred_check
              _
            $region58: #{policy_forward.1} parent=55 // pred_check_branch
              %572 = sbr.rel (0) target = $region60
            $region59: #{policy_forward.1} parent=55 // pred_region
              // Predicated region
              $region79: #{policy_forward.1} parent=59 // pred_check
                _
              $region80: #{policy_forward.1} parent=59 // pred_check_branch
                %627 = sbr.rel (0) target = $region82
              $region81: #{policy_forward.1} parent=59 // pred_region
                %s628 = sdiv.u32.pop %s563, 3
                %s629 = srem.u32.pop %s563, 3
                // While loop
                $region83: #{policy_forward.1} parent=81 // loop_pre_header
                  _
                $region84: #{policy_forward.1} parent=81 // loop_header
                  %s631 = sphi 0, %s633
                  %p632 = scmp.ge.s32.totalorder %s631, %s628
                  %s636 = sphi 0, %s647
                  %s637 = sphi %s552, %s650
                  %s638 = sphi %s567, %s651
                $region85: #{policy_forward.1} parent=81 // loop_header_branch
                  %635 = sbr.rel (%p632) target = $region89
                $region86: #{policy_forward.1} parent=81 // loop_body
                  %v639 = vld [vmem:[%s637] sm:$0xff]
                  %640 = vst [vmem:[%s638] sm:$0xff] %v639
                  %v641 = vld [vmem:[%s637 + $0x8] sm:$0xff]
                  %642 = vst [vmem:[%s638 + $0x8] sm:$0xff] %v641
                  %v643 = vld [vmem:[%s637 + $0x10] sm:$0xff]
                  %644 = vst [vmem:[%s638 + $0x10] sm:$0xff] %v643
                  %s645 = sadd.s32 1, %s636
                  %p646 = scmp.ge.s32.totalorder %s645, %s628
                  %s647 = scalar_select %p646, 0, %s645
                  %s648 = smul.u32 %s647, 24
                  %s649 = smul.u32 %s647, 24
                  %s650 = scalar_lea.vmem %s552, %s648 [#allocation2]
                  %s651 = scalar_lea.vmem %s567, %s649
                $region87: #{policy_forward.1} parent=81 // loop_footer
                  %s633 = sadd.s32 %s631, 1
                $region88: #{policy_forward.1} parent=81 // loop_footer_branch
                  %630 = sbr.rel target = $region84
                $region89: #{policy_forward.1} parent=81 // loop_exit
                  _
                %s652 = sdiv.u32.pop %s563, 3
                %s653 = srem.u32.pop %s563, 3
                %s654 = smul.u32 %s652, 3
                %s655 = smul.u32 8, %s654
                %s656 = scalar_lea.vmem %s552, %s655 [#allocation2]
                %s657 = smul.u32 8, %s654
                %s658 = scalar_lea.vmem %s567, %s657
                // While loop
                $region90: #{policy_forward.1} parent=81 // loop_pre_header
                  _
                $region91: #{policy_forward.1} parent=81 // loop_header
                  %s660 = sphi 0, %s662
                  %p661 = scmp.ge.s32.totalorder %s660, %s653
                  %s665 = sphi 0, %s672
                  %s666 = sphi %s656, %s675
                  %s667 = sphi %s658, %s676
                $region92: #{policy_forward.1} parent=81 // loop_header_branch
                  %664 = sbr.rel (%p661) target = $region96
                $region93: #{policy_forward.1} parent=81 // loop_body
                  %v668 = vld [vmem:[%s666] sm:$0xff]
                  %669 = vst [vmem:[%s667] sm:$0xff] %v668
                  %s670 = sadd.s32 1, %s665
                  %p671 = scmp.ge.s32.totalorder %s670, %s653
                  %s672 = scalar_select %p671, 0, %s670
                  %s673 = smul.u32 %s672, 8
                  %s674 = smul.u32 %s672, 8
                  %s675 = scalar_lea.vmem %s656, %s673 [#allocation2]
                  %s676 = scalar_lea.vmem %s658, %s674
                $region94: #{policy_forward.1} parent=81 // loop_footer
                  %s662 = sadd.s32 %s660, 1
                $region95: #{policy_forward.1} parent=81 // loop_footer_branch
                  %659 = sbr.rel target = $region91
                $region96: #{policy_forward.1} parent=81 // loop_exit
                  _
              $region82: #{policy_forward.1} parent=59 // pred_fallthru
                _
              // Predicated region
              $region97: #{policy_forward.1} parent=59 // pred_check
                _
              $region98: #{policy_forward.1} parent=59 // pred_check_branch
                %678 = sbr.rel target = $region100
              $region99: #{policy_forward.1} parent=59 // pred_region
                _
              $region100: #{policy_forward.1} parent=59 // pred_fallthru
                _
            $region60: #{policy_forward.1} parent=55 // pred_fallthru
              _
            // Predicated region
            $region61: #{policy_forward.1} parent=55 // pred_check
              _
            $region62: #{policy_forward.1} parent=55 // pred_check_branch
              %574 = sbr.rel target = $region64
            $region63: #{policy_forward.1} parent=55 // pred_region
              %s576 = ssub.s32 256, 1
              %s577 = sdiv.u32.pop %s563, 3
              %s578 = srem.u32.pop %s563, 3
              // While loop
              $region65: #{policy_forward.1} parent=63 // loop_pre_header
                _
              $region66: #{policy_forward.1} parent=63 // loop_header
                %s580 = sphi 0, %s582
                %p581 = scmp.ge.s32.totalorder %s580, %s577
                %s585 = sphi 0, %s596
                %s586 = sphi %s552, %s599
                %s587 = sphi %s567, %s600
              $region67: #{policy_forward.1} parent=63 // loop_header_branch
                %584 = sbr.rel (%p581) target = $region71
              $region68: #{policy_forward.1} parent=63 // loop_body
                %v588 = vld [vmem:[%s586] sm:%s576]
                %589 = vst [vmem:[%s587] sm:%s576] %v588
                %v590 = vld [vmem:[%s586 + $0x8] sm:%s576]
                %591 = vst [vmem:[%s587 + $0x8] sm:%s576] %v590
                %v592 = vld [vmem:[%s586 + $0x10] sm:%s576]
                %593 = vst [vmem:[%s587 + $0x10] sm:%s576] %v592
                %s594 = sadd.s32 1, %s585
                %p595 = scmp.ge.s32.totalorder %s594, %s577
                %s596 = scalar_select %p595, 0, %s594
                %s597 = smul.u32 %s596, 24
                %s598 = smul.u32 %s596, 24
                %s599 = scalar_lea.vmem %s552, %s597 [#allocation2]
                %s600 = scalar_lea.vmem %s567, %s598
              $region69: #{policy_forward.1} parent=63 // loop_footer
                %s582 = sadd.s32 %s580, 1
              $region70: #{policy_forward.1} parent=63 // loop_footer_branch
                %579 = sbr.rel target = $region66
              $region71: #{policy_forward.1} parent=63 // loop_exit
                _
              %s601 = sdiv.u32.pop %s563, 3
              %s602 = srem.u32.pop %s563, 3
              %s603 = smul.u32 %s601, 3
              %s604 = smul.u32 8, %s603
              %s605 = scalar_lea.vmem %s552, %s604 [#allocation2]
              %s606 = smul.u32 8, %s603
              %s607 = scalar_lea.vmem %s567, %s606
              // While loop
              $region72: #{policy_forward.1} parent=63 // loop_pre_header
                _
              $region73: #{policy_forward.1} parent=63 // loop_header
                %s609 = sphi 0, %s611
                %p610 = scmp.ge.s32.totalorder %s609, %s602
                %s614 = sphi 0, %s621
                %s615 = sphi %s605, %s624
                %s616 = sphi %s607, %s625
              $region74: #{policy_forward.1} parent=63 // loop_header_branch
                %613 = sbr.rel (%p610) target = $region78
              $region75: #{policy_forward.1} parent=63 // loop_body
                %v617 = vld [vmem:[%s615] sm:%s576]
                %618 = vst [vmem:[%s616] sm:%s576] %v617
                %s619 = sadd.s32 1, %s614
                %p620 = scmp.ge.s32.totalorder %s619, %s602
                %s621 = scalar_select %p620, 0, %s619
                %s622 = smul.u32 %s621, 8
                %s623 = smul.u32 %s621, 8
                %s624 = scalar_lea.vmem %s605, %s622 [#allocation2]
                %s625 = scalar_lea.vmem %s607, %s623
              $region76: #{policy_forward.1} parent=63 // loop_footer
                %s611 = sadd.s32 %s609, 1
              $region77: #{policy_forward.1} parent=63 // loop_footer_branch
                %608 = sbr.rel target = $region73
              $region78: #{policy_forward.1} parent=63 // loop_exit
                _
            $region64: #{policy_forward.1} parent=55 // pred_fallthru
              _
          $region56: #{policy_forward.1} parent=51 // pred_fallthru
            _
          %679 = vnop
        $region52: #{policy_forward.1} parent=47 // pred_fallthru
          _
        // Predicated region
        $region101: #{policy_forward.1} parent=47 // pred_check
          %p680 = pneg %p216
        $region102: #{policy_forward.1} parent=47 // pred_check_branch
          %682 = sbr.rel (%p680) target = $region104
        $region103: #{policy_forward.1} parent=47 // pred_region
          %s683 = smul.u32 3, %s20
          %s684 = ssub.s32 5, %s683
          %p685 = scmp.lt.s32.totalorder %s684, 3
          %s686 = scalar_select %p685, %s684, 3
          %s687 = smul.u32 8, %s686
          %p688 = scmp.ne.s32.totalorder 0, %s687
          %s689 = smul.addr %s683, 8
          %s690 = scalar_lea.vmem %s8, %s689
          // Predicated region
          $region105: #{policy_forward.1} parent=103 // pred_check
            %p691 = pneg %p688
          $region106: #{policy_forward.1} parent=103 // pred_check_branch
            %693 = sbr.rel (%p691) target = $region108
          $region107: #{policy_forward.1} parent=103 // pred_region
            // Predicated region
            $region109: #{policy_forward.1} parent=107 // pred_check
              _
            $region110: #{policy_forward.1} parent=107 // pred_check_branch
              %695 = sbr.rel (0) target = $region112
            $region111: #{policy_forward.1} parent=107 // pred_region
              // Predicated region
              $region131: #{policy_forward.1} parent=111 // pred_check
                _
              $region132: #{policy_forward.1} parent=111 // pred_check_branch
                %750 = sbr.rel (0) target = $region134
              $region133: #{policy_forward.1} parent=111 // pred_region
                %s751 = sdiv.u32.pop %s686, 3
                %s752 = srem.u32.pop %s686, 3
                // While loop
                $region135: #{policy_forward.1} parent=133 // loop_pre_header
                  _
                $region136: #{policy_forward.1} parent=133 // loop_header
                  %s754 = sphi 0, %s756
                  %p755 = scmp.ge.s32.totalorder %s754, %s751
                  %s759 = sphi 0, %s770
                  %s760 = sphi %s556, %s773
                  %s761 = sphi %s690, %s774
                $region137: #{policy_forward.1} parent=133 // loop_header_branch
                  %758 = sbr.rel (%p755) target = $region141
                $region138: #{policy_forward.1} parent=133 // loop_body
                  %v762 = vld [vmem:[%s760] sm:$0xff]
                  %763 = vst [vmem:[%s761] sm:$0xff] %v762
                  %v764 = vld [vmem:[%s760 + $0x8] sm:$0xff]
                  %765 = vst [vmem:[%s761 + $0x8] sm:$0xff] %v764
                  %v766 = vld [vmem:[%s760 + $0x10] sm:$0xff]
                  %767 = vst [vmem:[%s761 + $0x10] sm:$0xff] %v766
                  %s768 = sadd.s32 1, %s759
                  %p769 = scmp.ge.s32.totalorder %s768, %s751
                  %s770 = scalar_select %p769, 0, %s768
                  %s771 = smul.u32 %s770, 24
                  %s772 = smul.u32 %s770, 24
                  %s773 = scalar_lea.vmem %s556, %s771 [#allocation3]
                  %s774 = scalar_lea.vmem %s690, %s772
                $region139: #{policy_forward.1} parent=133 // loop_footer
                  %s756 = sadd.s32 %s754, 1
                $region140: #{policy_forward.1} parent=133 // loop_footer_branch
                  %753 = sbr.rel target = $region136
                $region141: #{policy_forward.1} parent=133 // loop_exit
                  _
                %s775 = sdiv.u32.pop %s686, 3
                %s776 = srem.u32.pop %s686, 3
                %s777 = smul.u32 %s775, 3
                %s778 = smul.u32 8, %s777
                %s779 = scalar_lea.vmem %s556, %s778 [#allocation3]
                %s780 = smul.u32 8, %s777
                %s781 = scalar_lea.vmem %s690, %s780
                // While loop
                $region142: #{policy_forward.1} parent=133 // loop_pre_header
                  _
                $region143: #{policy_forward.1} parent=133 // loop_header
                  %s783 = sphi 0, %s785
                  %p784 = scmp.ge.s32.totalorder %s783, %s776
                  %s788 = sphi 0, %s795
                  %s789 = sphi %s779, %s798
                  %s790 = sphi %s781, %s799
                $region144: #{policy_forward.1} parent=133 // loop_header_branch
                  %787 = sbr.rel (%p784) target = $region148
                $region145: #{policy_forward.1} parent=133 // loop_body
                  %v791 = vld [vmem:[%s789] sm:$0xff]
                  %792 = vst [vmem:[%s790] sm:$0xff] %v791
                  %s793 = sadd.s32 1, %s788
                  %p794 = scmp.ge.s32.totalorder %s793, %s776
                  %s795 = scalar_select %p794, 0, %s793
                  %s796 = smul.u32 %s795, 8
                  %s797 = smul.u32 %s795, 8
                  %s798 = scalar_lea.vmem %s779, %s796 [#allocation3]
                  %s799 = scalar_lea.vmem %s781, %s797
                $region146: #{policy_forward.1} parent=133 // loop_footer
                  %s785 = sadd.s32 %s783, 1
                $region147: #{policy_forward.1} parent=133 // loop_footer_branch
                  %782 = sbr.rel target = $region143
                $region148: #{policy_forward.1} parent=133 // loop_exit
                  _
              $region134: #{policy_forward.1} parent=111 // pred_fallthru
                _
              // Predicated region
              $region149: #{policy_forward.1} parent=111 // pred_check
                _
              $region150: #{policy_forward.1} parent=111 // pred_check_branch
                %801 = sbr.rel target = $region152
              $region151: #{policy_forward.1} parent=111 // pred_region
                _
              $region152: #{policy_forward.1} parent=111 // pred_fallthru
                _
            $region112: #{policy_forward.1} parent=107 // pred_fallthru
              _
            // Predicated region
            $region113: #{policy_forward.1} parent=107 // pred_check
              _
            $region114: #{policy_forward.1} parent=107 // pred_check_branch
              %697 = sbr.rel target = $region116
            $region115: #{policy_forward.1} parent=107 // pred_region
              %s699 = ssub.s32 256, 1
              %s700 = sdiv.u32.pop %s686, 3
              %s701 = srem.u32.pop %s686, 3
              // While loop
              $region117: #{policy_forward.1} parent=115 // loop_pre_header
                _
              $region118: #{policy_forward.1} parent=115 // loop_header
                %s703 = sphi 0, %s705
                %p704 = scmp.ge.s32.totalorder %s703, %s700
                %s708 = sphi 0, %s719
                %s709 = sphi %s556, %s722
                %s710 = sphi %s690, %s723
              $region119: #{policy_forward.1} parent=115 // loop_header_branch
                %707 = sbr.rel (%p704) target = $region123
              $region120: #{policy_forward.1} parent=115 // loop_body
                %v711 = vld [vmem:[%s709] sm:%s699]
                %712 = vst [vmem:[%s710] sm:%s699] %v711
                %v713 = vld [vmem:[%s709 + $0x8] sm:%s699]
                %714 = vst [vmem:[%s710 + $0x8] sm:%s699] %v713
                %v715 = vld [vmem:[%s709 + $0x10] sm:%s699]
                %716 = vst [vmem:[%s710 + $0x10] sm:%s699] %v715
                %s717 = sadd.s32 1, %s708
                %p718 = scmp.ge.s32.totalorder %s717, %s700
                %s719 = scalar_select %p718, 0, %s717
                %s720 = smul.u32 %s719, 24
                %s721 = smul.u32 %s719, 24
                %s722 = scalar_lea.vmem %s556, %s720 [#allocation3]
                %s723 = scalar_lea.vmem %s690, %s721
              $region121: #{policy_forward.1} parent=115 // loop_footer
                %s705 = sadd.s32 %s703, 1
              $region122: #{policy_forward.1} parent=115 // loop_footer_branch
                %702 = sbr.rel target = $region118
              $region123: #{policy_forward.1} parent=115 // loop_exit
                _
              %s724 = sdiv.u32.pop %s686, 3
              %s725 = srem.u32.pop %s686, 3
              %s726 = smul.u32 %s724, 3
              %s727 = smul.u32 8, %s726
              %s728 = scalar_lea.vmem %s556, %s727 [#allocation3]
              %s729 = smul.u32 8, %s726
              %s730 = scalar_lea.vmem %s690, %s729
              // While loop
              $region124: #{policy_forward.1} parent=115 // loop_pre_header
                _
              $region125: #{policy_forward.1} parent=115 // loop_header
                %s732 = sphi 0, %s734
                %p733 = scmp.ge.s32.totalorder %s732, %s725
                %s737 = sphi 0, %s744
                %s738 = sphi %s728, %s747
                %s739 = sphi %s730, %s748
              $region126: #{policy_forward.1} parent=115 // loop_header_branch
                %736 = sbr.rel (%p733) target = $region130
              $region127: #{policy_forward.1} parent=115 // loop_body
                %v740 = vld [vmem:[%s738] sm:%s699]
                %741 = vst [vmem:[%s739] sm:%s699] %v740
                %s742 = sadd.s32 1, %s737
                %p743 = scmp.ge.s32.totalorder %s742, %s725
                %s744 = scalar_select %p743, 0, %s742
                %s745 = smul.u32 %s744, 8
                %s746 = smul.u32 %s744, 8
                %s747 = scalar_lea.vmem %s728, %s745 [#allocation3]
                %s748 = scalar_lea.vmem %s730, %s746
              $region128: #{policy_forward.1} parent=115 // loop_footer
                %s734 = sadd.s32 %s732, 1
              $region129: #{policy_forward.1} parent=115 // loop_footer_branch
                %731 = sbr.rel target = $region125
              $region130: #{policy_forward.1} parent=115 // loop_exit
                _
            $region116: #{policy_forward.1} parent=107 // pred_fallthru
              _
          $region108: #{policy_forward.1} parent=103 // pred_fallthru
            _
          %802 = vnop
        $region104: #{policy_forward.1} parent=47 // pred_fallthru
          _
      $region48: #{policy_forward.1} parent=5 // pred_fallthru
        _
      %p803 = scmp.le.s32.totalorder 2, %s15
      // Predicated region
      $region153: #{policy_forward.1} parent=5 // pred_check
        %p804 = pneg %p803
      $region154: #{policy_forward.1} parent=5 // pred_check_branch
        %806 = sbr.rel (%p804) target = $region156
      $region155: #{policy_forward.1} parent=5 // pred_region
        %s807 = ssub.s32 %s15, 2
        // Predicated region
        $region157: #{policy_forward.1} parent=155 // pred_check
          %p808 = pneg %p196
        $region158: #{policy_forward.1} parent=155 // pred_check_branch
          %810 = sbr.rel (%p808) target = $region160
        $region159: #{policy_forward.1} parent=155 // pred_region
          %s811 = sand.u32 %s181, 1
          %s812 = sand.u32 %s181, 1
          %s813 = smul.addr %s812, 24
          %s814 = scalar_lea.vmem [#allocation2], %s813
        $region160: #{policy_forward.1} parent=155 // pred_fallthru
          _
        // Predicated region
        $region161: #{policy_forward.1} parent=155 // pred_check
          %p815 = pneg %p222
        $region162: #{policy_forward.1} parent=155 // pred_check_branch
          %817 = sbr.rel (%p815) target = $region164
        $region163: #{policy_forward.1} parent=155 // pred_region
          %s818 = sand.u32 %s207, 1
          %s819 = sand.u32 %s207, 1
          %s820 = smul.addr %s819, 24
          %s821 = scalar_lea.vmem [#allocation3], %s820
        $region164: #{policy_forward.1} parent=155 // pred_fallthru
          _
      $region156: #{policy_forward.1} parent=5 // pred_fallthru
        _
    $region6: #{policy_forward.1} parent=1 // loop_footer
      %s19 = sadd.s32 1, %s15
    $region7: #{policy_forward.1} parent=1 // loop_footer_branch
      %14 = sbr.rel target = $region3
    $region8: #{policy_forward.1} parent=1 // loop_exit
      _

</llo_original>
